<compile_context>
chip_gen: v6e
topology: v6e:2x2x1
jax: 0.10.0
libtpu: 0.0.40
codegen_flags: <defaults>
</compile_context>

<pallas_src>
import functools

import jax
import jax.numpy as jnp
from jax.experimental import pallas as pl
from jax.experimental.pallas import tpu as pltpu

HIDDEN_SIZE = 50
INPUT_SIZE = 1
NUM_LAYERS = 1      # kernel below implements the single-layer case
OUTPUT_SIZE = 1


def _round_up(n, m):
    return (n + m - 1) // m * m


def lstm_kernel(x_ref, wih_ref, b_ref, whh_ref, wfc_ref, bfc_ref, out_ref,
                *, t_steps, bp, hp):
    # x_ref   : (T*Bp, Ip)   time-major, batch/feature zero-padded input
    # wih_ref : (Ip, 4*Hp)   fused input weights, gate order [i, f, o, g]
    # b_ref   : (1, 4*Hp)    b_ih + b_hh, fused + zero-padded
    # whh_ref : (Hp, 4*Hp)   fused recurrent weights, zero-padded
    # wfc_ref : (Hp, Op), bfc_ref : (1, Op)
    # out_ref : (Bp, Op)
    #
    # Input projection for ALL T steps in one MXU contraction (h-independent),
    # hoisted out of the serial recurrence but kept inside this kernel.
    xproj = (jnp.dot(x_ref[...], wih_ref[...], preferred_element_type=jnp.float32)
             + b_ref[...])                                    # (T*Bp, 4*Hp) vreg-resident

    whh = whh_ref[...]                                        # load once, reuse every step

    h = jnp.zeros((bp, hp), jnp.float32)
    c = jnp.zeros((bp, hp), jnp.float32)

    # T is small and static: full unroll with concrete indices; h/c stay in vregs.
    for t in range(t_steps):
        pre = xproj[t * bp:(t + 1) * bp, :] + jnp.dot(
            h, whh, preferred_element_type=jnp.float32)       # (Bp, 4*Hp)
        ifo = jax.nn.sigmoid(pre[:, : 3 * hp])                # one sigmoid slab: i | f | o
        g = jnp.tanh(pre[:, 3 * hp:])                         # one tanh slab:    g
        c = ifo[:, hp: 2 * hp] * c + ifo[:, :hp] * g
        h = ifo[:, 2 * hp:] * jnp.tanh(c)

    # Final Linear on the last hidden state; (Bp, Op) is a full lane-dense store.
    out_ref[...] = (jnp.dot(h, wfc_ref[...], preferred_element_type=jnp.float32)
                    + bfc_ref[...])


def lstm_model_forward(x, w_ih, w_hh, bias, w_fc, b_fc):
    """x: (B, T, I) float32 (PyTorch batch_first layout).

    w_ih: (4, I, H), w_hh: (4, H, H), bias: (4, 1, H) = b_ih + b_hh
    (gate order i, f, g, o — PyTorch convention), w_fc: (H, O), b_fc: (1, O).
    """
    B, T, I = x.shape
    H = w_hh.shape[-1]
    O = w_fc.shape[-1]

    Hp = 64 if H <= 64 else _round_up(H, 128)   # lane-friendly hidden size
    Bp = _round_up(B, 8)                        # sublane-aligned batch
    Ip = _round_up(I, 8)                        # MXU contraction dim for input proj
    Op = _round_up(O, 128)                      # lane-dense output store

    order = [0, 1, 3, 2]                        # PyTorch (i,f,g,o) -> kernel (i,f,o,g)

    def fuse_gates(w):                          # (4, X, H) -> (X, 4*Hp), zero-padded
        w = jnp.pad(w, ((0, 0), (0, 0), (0, Hp - H)))
        return jnp.concatenate([w[k] for k in order], axis=-1)

    wih_f = jnp.pad(fuse_gates(w_ih), ((0, Ip - I), (0, 0)))        # (Ip, 4*Hp)
    whh_f = jnp.pad(fuse_gates(w_hh), ((0, Hp - H), (0, 0)))        # (Hp, 4*Hp)
    b_f = fuse_gates(bias)                                          # (1, 4*Hp)

    # (B, T, I) -> time-major, padded, flattened: (T*Bp, Ip)
    x_t = jnp.transpose(x, (1, 0, 2))
    x_t = jnp.pad(x_t, ((0, 0), (0, Bp - B), (0, Ip - I)))
    x2 = x_t.reshape(T * Bp, Ip)

    wfc_p = jnp.pad(w_fc, ((0, Hp - H), (0, Op - O)))               # (Hp, Op)
    bfc_p = jnp.pad(b_fc, ((0, 0), (0, Op - O)))                    # (1, Op)

    vmem = pl.BlockSpec(memory_space=pltpu.MemorySpace.VMEM)
    out_p = pl.pallas_call(
        functools.partial(lstm_kernel, t_steps=T, bp=Bp, hp=Hp),
        out_shape=jax.ShapeDtypeStruct((Bp, Op), jnp.float32),
        in_specs=[vmem] * 6,
        out_specs=vmem,
    )(x2, wih_f, b_f, whh_f, wfc_p, bfc_p)
    # TODO(synk): if B grows, add a batch grid axis (dimension_semantics=("parallel",))
    # so v7x's second TensorCore is used; unnecessary at B=2.
    return out_p[:B, :O]


def lstm_reference(x_btI, w_ih, w_hh, bias, w_fc, b_fc):
    """Pure-JAX reference matching nn.LSTM(batch_first=True) + Linear."""
    B, T, I = x_btI.shape
    H = w_hh.shape[-1]
    h = jnp.zeros((B, H), jnp.float32)
    c = jnp.zeros((B, H), jnp.float32)
    for t in range(T):
        xt = x_btI[:, t, :]
        i_g = jax.nn.sigmoid(xt @ w_ih[0] + h @ w_hh[0] + bias[0])
        f_g = jax.nn.sigmoid(xt @ w_ih[1] + h @ w_hh[1] + bias[1])
        g_g = jnp.tanh(xt @ w_ih[2] + h @ w_hh[2] + bias[2])
        o_g = jax.nn.sigmoid(xt @ w_ih[3] + h @ w_hh[3] + bias[3])
        c = f_g * c + i_g * g_g
        h = o_g * jnp.tanh(c)
    return h @ w_fc + b_fc


if __name__ == "__main__":
    B, T = 2, 8
    I, H, O = INPUT_SIZE, HIDDEN_SIZE, OUTPUT_SIZE

    key = jax.random.PRNGKey(0)
    k_x, k_wih, k_whh, k_bih, k_bhh, k_wfc, k_bfc = jax.random.split(key, 7)

    # Deterministic init, PyTorch-style uniform(-1/sqrt(H), 1/sqrt(H)).
    bound = 1.0 / jnp.sqrt(jnp.float32(H))
    # Stacked per-gate weights (gate order i, f, g, o), stored as (in, out).
    w_ih = jax.random.uniform(k_wih, (4, I, H), jnp.float32, -bound, bound)
    w_hh = jax.random.uniform(k_whh, (4, H, H), jnp.float32, -bound, bound)
    b_ih = jax.random.uniform(k_bih, (4, 1, H), jnp.float32, -bound, bound)
    b_hh = jax.random.uniform(k_bhh, (4, 1, H), jnp.float32, -bound, bound)
    bias = b_ih + b_hh
    w_fc = jax.random.uniform(k_wfc, (H, O), jnp.float32, -bound, bound)
    b_fc = jax.random.uniform(k_bfc, (1, O), jnp.float32, -bound, bound)

    x = jax.random.normal(k_x, (B, T, I), jnp.float32)

    fwd = jax.jit(lstm_model_forward)
    out = fwd(x, w_ih, w_hh, bias, w_fc, b_fc)
    out = jax.block_until_ready(out)

    ref = lstm_reference(x, w_ih, w_hh, bias, w_fc, b_fc)
    assert out.shape == (B, O)
    assert jnp.allclose(out, ref, atol=1e-5, rtol=1e-5), (out, ref)

    print("KERNEL_OK")
</pallas_src>

<mosaic_0001>
module attributes {stable_mosaic.version = 11 : i64} {
  func.func @lstm_kernel(%arg0: memref<64x8xf32, #tpu.memory_space<vmem>>, %arg1: memref<8x256xf32, #tpu.memory_space<vmem>>, %arg2: memref<1x256xf32, #tpu.memory_space<vmem>>, %arg3: memref<64x256xf32, #tpu.memory_space<vmem>>, %arg4: memref<64x128xf32, #tpu.memory_space<vmem>>, %arg5: memref<1x128xf32, #tpu.memory_space<vmem>>, %arg6: memref<8x128xf32, #tpu.memory_space<vmem>>) attributes {dimension_semantics = [], scalar_prefetch = 0 : i64, scratch_operands = 0 : i64, tpu.core_type = #tpu.core_type<tc>} {
    %c0 = arith.constant 0 : index
    %c0_0 = arith.constant 0 : index
    %0 = vector.load %arg0[%c0, %c0_0] : memref<64x8xf32, #tpu.memory_space<vmem>>, vector<64x8xf32>
    %c0_1 = arith.constant 0 : index
    %c0_2 = arith.constant 0 : index
    %1 = vector.load %arg1[%c0_1, %c0_2] : memref<8x256xf32, #tpu.memory_space<vmem>>, vector<8x256xf32>
    %cst = arith.constant dense<0.000000e+00> : vector<64x256xf32>
    %2 = tpu.matmul %0, %1, %cst {dimension_numbers = #tpu.dot_dimension_numbers<[1], [0], [0], [1], [0, 0, 1, 1], [], []>} : vector<64x8xf32>, vector<8x256xf32>, vector<64x256xf32> -> vector<64x256xf32>
    %c0_3 = arith.constant 0 : index
    %c0_4 = arith.constant 0 : index
    %3 = vector.load %arg2[%c0_3, %c0_4] : memref<1x256xf32, #tpu.memory_space<vmem>>, vector<1x256xf32>
    %4 = vector.broadcast %3 : vector<1x256xf32> to vector<64x256xf32>
    %5 = arith.addf %2, %4 : vector<64x256xf32>
    %c0_5 = arith.constant 0 : index
    %c0_6 = arith.constant 0 : index
    %6 = vector.load %arg3[%c0_5, %c0_6] : memref<64x256xf32, #tpu.memory_space<vmem>>, vector<64x256xf32>
    %cst_7 = arith.constant 0.000000e+00 : f32
    %7 = vector.broadcast %cst_7 : f32 to vector<8x64xf32>
    %cst_8 = arith.constant 0.000000e+00 : f32
    %8 = vector.broadcast %cst_8 : f32 to vector<8x64xf32>
    %9 = vector.extract_strided_slice %5 {offsets = [0, 0], sizes = [8, 256], strides = [1, 1]} : vector<64x256xf32> to vector<8x256xf32>
    %cst_9 = arith.constant dense<0.000000e+00> : vector<8x256xf32>
    %10 = tpu.matmul %7, %6, %cst_9 {dimension_numbers = #tpu.dot_dimension_numbers<[1], [0], [0], [1], [0, 0, 1, 1], [], []>} : vector<8x64xf32>, vector<64x256xf32>, vector<8x256xf32> -> vector<8x256xf32>
    %11 = arith.addf %9, %10 : vector<8x256xf32>
    %12 = vector.extract_strided_slice %11 {offsets = [0, 0], sizes = [8, 192], strides = [1, 1]} : vector<8x256xf32> to vector<8x192xf32>
    %13 = arith.negf %12 : vector<8x192xf32>
    %14 = math.exp %13 : vector<8x192xf32>
    %cst_10 = arith.constant 1.000000e+00 : f32
    %15 = vector.broadcast %cst_10 : f32 to vector<8x192xf32>
    %16 = arith.addf %15, %14 : vector<8x192xf32>
    %17 = arith.divf %15, %16 : vector<8x192xf32>
    %18 = vector.extract_strided_slice %11 {offsets = [0, 192], sizes = [8, 64], strides = [1, 1]} : vector<8x256xf32> to vector<8x64xf32>
    %19 = math.tanh %18 : vector<8x64xf32>
    %20 = vector.extract_strided_slice %17 {offsets = [0, 64], sizes = [8, 64], strides = [1, 1]} : vector<8x192xf32> to vector<8x64xf32>
    %21 = arith.mulf %20, %8 : vector<8x64xf32>
    %22 = vector.extract_strided_slice %17 {offsets = [0, 0], sizes = [8, 64], strides = [1, 1]} : vector<8x192xf32> to vector<8x64xf32>
    %23 = arith.mulf %22, %19 : vector<8x64xf32>
    %24 = arith.addf %21, %23 : vector<8x64xf32>
    %25 = vector.extract_strided_slice %17 {offsets = [0, 128], sizes = [8, 64], strides = [1, 1]} : vector<8x192xf32> to vector<8x64xf32>
    %26 = math.tanh %24 : vector<8x64xf32>
    %27 = arith.mulf %25, %26 : vector<8x64xf32>
    %28 = vector.extract_strided_slice %5 {offsets = [8, 0], sizes = [8, 256], strides = [1, 1]} : vector<64x256xf32> to vector<8x256xf32>
    %cst_11 = arith.constant dense<0.000000e+00> : vector<8x256xf32>
    %29 = tpu.matmul %27, %6, %cst_11 {dimension_numbers = #tpu.dot_dimension_numbers<[1], [0], [0], [1], [0, 0, 1, 1], [], []>} : vector<8x64xf32>, vector<64x256xf32>, vector<8x256xf32> -> vector<8x256xf32>
    %30 = arith.addf %28, %29 : vector<8x256xf32>
    %31 = vector.extract_strided_slice %30 {offsets = [0, 0], sizes = [8, 192], strides = [1, 1]} : vector<8x256xf32> to vector<8x192xf32>
    %32 = arith.negf %31 : vector<8x192xf32>
    %33 = math.exp %32 : vector<8x192xf32>
    %cst_12 = arith.constant 1.000000e+00 : f32
    %34 = vector.broadcast %cst_12 : f32 to vector<8x192xf32>
    %35 = arith.addf %34, %33 : vector<8x192xf32>
    %36 = arith.divf %34, %35 : vector<8x192xf32>
    %37 = vector.extract_strided_slice %30 {offsets = [0, 192], sizes = [8, 64], strides = [1, 1]} : vector<8x256xf32> to vector<8x64xf32>
    %38 = math.tanh %37 : vector<8x64xf32>
    %39 = vector.extract_strided_slice %36 {offsets = [0, 64], sizes = [8, 64], strides = [1, 1]} : vector<8x192xf32> to vector<8x64xf32>
    %40 = arith.mulf %39, %24 : vector<8x64xf32>
    %41 = vector.extract_strided_slice %36 {offsets = [0, 0], sizes = [8, 64], strides = [1, 1]} : vector<8x192xf32> to vector<8x64xf32>
    %42 = arith.mulf %41, %38 : vector<8x64xf32>
    %43 = arith.addf %40, %42 : vector<8x64xf32>
    %44 = vector.extract_strided_slice %36 {offsets = [0, 128], sizes = [8, 64], strides = [1, 1]} : vector<8x192xf32> to vector<8x64xf32>
    %45 = math.tanh %43 : vector<8x64xf32>
    %46 = arith.mulf %44, %45 : vector<8x64xf32>
    %47 = vector.extract_strided_slice %5 {offsets = [16, 0], sizes = [8, 256], strides = [1, 1]} : vector<64x256xf32> to vector<8x256xf32>
    %cst_13 = arith.constant dense<0.000000e+00> : vector<8x256xf32>
    %48 = tpu.matmul %46, %6, %cst_13 {dimension_numbers = #tpu.dot_dimension_numbers<[1], [0], [0], [1], [0, 0, 1, 1], [], []>} : vector<8x64xf32>, vector<64x256xf32>, vector<8x256xf32> -> vector<8x256xf32>
    %49 = arith.addf %47, %48 : vector<8x256xf32>
    %50 = vector.extract_strided_slice %49 {offsets = [0, 0], sizes = [8, 192], strides = [1, 1]} : vector<8x256xf32> to vector<8x192xf32>
    %51 = arith.negf %50 : vector<8x192xf32>
    %52 = math.exp %51 : vector<8x192xf32>
    %cst_14 = arith.constant 1.000000e+00 : f32
    %53 = vector.broadcast %cst_14 : f32 to vector<8x192xf32>
    %54 = arith.addf %53, %52 : vector<8x192xf32>
    %55 = arith.divf %53, %54 : vector<8x192xf32>
    %56 = vector.extract_strided_slice %49 {offsets = [0, 192], sizes = [8, 64], strides = [1, 1]} : vector<8x256xf32> to vector<8x64xf32>
    %57 = math.tanh %56 : vector<8x64xf32>
    %58 = vector.extract_strided_slice %55 {offsets = [0, 64], sizes = [8, 64], strides = [1, 1]} : vector<8x192xf32> to vector<8x64xf32>
    %59 = arith.mulf %58, %43 : vector<8x64xf32>
    %60 = vector.extract_strided_slice %55 {offsets = [0, 0], sizes = [8, 64], strides = [1, 1]} : vector<8x192xf32> to vector<8x64xf32>
    %61 = arith.mulf %60, %57 : vector<8x64xf32>
    %62 = arith.addf %59, %61 : vector<8x64xf32>
    %63 = vector.extract_strided_slice %55 {offsets = [0, 128], sizes = [8, 64], strides = [1, 1]} : vector<8x192xf32> to vector<8x64xf32>
    %64 = math.tanh %62 : vector<8x64xf32>
    %65 = arith.mulf %63, %64 : vector<8x64xf32>
    %66 = vector.extract_strided_slice %5 {offsets = [24, 0], sizes = [8, 256], strides = [1, 1]} : vector<64x256xf32> to vector<8x256xf32>
    %cst_15 = arith.constant dense<0.000000e+00> : vector<8x256xf32>
    %67 = tpu.matmul %65, %6, %cst_15 {dimension_numbers = #tpu.dot_dimension_numbers<[1], [0], [0], [1], [0, 0, 1, 1], [], []>} : vector<8x64xf32>, vector<64x256xf32>, vector<8x256xf32> -> vector<8x256xf32>
    %68 = arith.addf %66, %67 : vector<8x256xf32>
    %69 = vector.extract_strided_slice %68 {offsets = [0, 0], sizes = [8, 192], strides = [1, 1]} : vector<8x256xf32> to vector<8x192xf32>
    %70 = arith.negf %69 : vector<8x192xf32>
    %71 = math.exp %70 : vector<8x192xf32>
    %cst_16 = arith.constant 1.000000e+00 : f32
    %72 = vector.broadcast %cst_16 : f32 to vector<8x192xf32>
    %73 = arith.addf %72, %71 : vector<8x192xf32>
    %74 = arith.divf %72, %73 : vector<8x192xf32>
    %75 = vector.extract_strided_slice %68 {offsets = [0, 192], sizes = [8, 64], strides = [1, 1]} : vector<8x256xf32> to vector<8x64xf32>
    %76 = math.tanh %75 : vector<8x64xf32>
    %77 = vector.extract_strided_slice %74 {offsets = [0, 64], sizes = [8, 64], strides = [1, 1]} : vector<8x192xf32> to vector<8x64xf32>
    %78 = arith.mulf %77, %62 : vector<8x64xf32>
    %79 = vector.extract_strided_slice %74 {offsets = [0, 0], sizes = [8, 64], strides = [1, 1]} : vector<8x192xf32> to vector<8x64xf32>
    %80 = arith.mulf %79, %76 : vector<8x64xf32>
    %81 = arith.addf %78, %80 : vector<8x64xf32>
    %82 = vector.extract_strided_slice %74 {offsets = [0, 128], sizes = [8, 64], strides = [1, 1]} : vector<8x192xf32> to vector<8x64xf32>
    %83 = math.tanh %81 : vector<8x64xf32>
    %84 = arith.mulf %82, %83 : vector<8x64xf32>
    %85 = vector.extract_strided_slice %5 {offsets = [32, 0], sizes = [8, 256], strides = [1, 1]} : vector<64x256xf32> to vector<8x256xf32>
    %cst_17 = arith.constant dense<0.000000e+00> : vector<8x256xf32>
    %86 = tpu.matmul %84, %6, %cst_17 {dimension_numbers = #tpu.dot_dimension_numbers<[1], [0], [0], [1], [0, 0, 1, 1], [], []>} : vector<8x64xf32>, vector<64x256xf32>, vector<8x256xf32> -> vector<8x256xf32>
    %87 = arith.addf %85, %86 : vector<8x256xf32>
    %88 = vector.extract_strided_slice %87 {offsets = [0, 0], sizes = [8, 192], strides = [1, 1]} : vector<8x256xf32> to vector<8x192xf32>
    %89 = arith.negf %88 : vector<8x192xf32>
    %90 = math.exp %89 : vector<8x192xf32>
    %cst_18 = arith.constant 1.000000e+00 : f32
    %91 = vector.broadcast %cst_18 : f32 to vector<8x192xf32>
    %92 = arith.addf %91, %90 : vector<8x192xf32>
    %93 = arith.divf %91, %92 : vector<8x192xf32>
    %94 = vector.extract_strided_slice %87 {offsets = [0, 192], sizes = [8, 64], strides = [1, 1]} : vector<8x256xf32> to vector<8x64xf32>
    %95 = math.tanh %94 : vector<8x64xf32>
    %96 = vector.extract_strided_slice %93 {offsets = [0, 64], sizes = [8, 64], strides = [1, 1]} : vector<8x192xf32> to vector<8x64xf32>
    %97 = arith.mulf %96, %81 : vector<8x64xf32>
    %98 = vector.extract_strided_slice %93 {offsets = [0, 0], sizes = [8, 64], strides = [1, 1]} : vector<8x192xf32> to vector<8x64xf32>
    %99 = arith.mulf %98, %95 : vector<8x64xf32>
    %100 = arith.addf %97, %99 : vector<8x64xf32>
    %101 = vector.extract_strided_slice %93 {offsets = [0, 128], sizes = [8, 64], strides = [1, 1]} : vector<8x192xf32> to vector<8x64xf32>
    %102 = math.tanh %100 : vector<8x64xf32>
    %103 = arith.mulf %101, %102 : vector<8x64xf32>
    %104 = vector.extract_strided_slice %5 {offsets = [40, 0], sizes = [8, 256], strides = [1, 1]} : vector<64x256xf32> to vector<8x256xf32>
    %cst_19 = arith.constant dense<0.000000e+00> : vector<8x256xf32>
    %105 = tpu.matmul %103, %6, %cst_19 {dimension_numbers = #tpu.dot_dimension_numbers<[1], [0], [0], [1], [0, 0, 1, 1], [], []>} : vector<8x64xf32>, vector<64x256xf32>, vector<8x256xf32> -> vector<8x256xf32>
    %106 = arith.addf %104, %105 : vector<8x256xf32>
    %107 = vector.extract_strided_slice %106 {offsets = [0, 0], sizes = [8, 192], strides = [1, 1]} : vector<8x256xf32> to vector<8x192xf32>
    %108 = arith.negf %107 : vector<8x192xf32>
    %109 = math.exp %108 : vector<8x192xf32>
    %cst_20 = arith.constant 1.000000e+00 : f32
    %110 = vector.broadcast %cst_20 : f32 to vector<8x192xf32>
    %111 = arith.addf %110, %109 : vector<8x192xf32>
    %112 = arith.divf %110, %111 : vector<8x192xf32>
    %113 = vector.extract_strided_slice %106 {offsets = [0, 192], sizes = [8, 64], strides = [1, 1]} : vector<8x256xf32> to vector<8x64xf32>
    %114 = math.tanh %113 : vector<8x64xf32>
    %115 = vector.extract_strided_slice %112 {offsets = [0, 64], sizes = [8, 64], strides = [1, 1]} : vector<8x192xf32> to vector<8x64xf32>
    %116 = arith.mulf %115, %100 : vector<8x64xf32>
    %117 = vector.extract_strided_slice %112 {offsets = [0, 0], sizes = [8, 64], strides = [1, 1]} : vector<8x192xf32> to vector<8x64xf32>
    %118 = arith.mulf %117, %114 : vector<8x64xf32>
    %119 = arith.addf %116, %118 : vector<8x64xf32>
    %120 = vector.extract_strided_slice %112 {offsets = [0, 128], sizes = [8, 64], strides = [1, 1]} : vector<8x192xf32> to vector<8x64xf32>
    %121 = math.tanh %119 : vector<8x64xf32>
    %122 = arith.mulf %120, %121 : vector<8x64xf32>
    %123 = vector.extract_strided_slice %5 {offsets = [48, 0], sizes = [8, 256], strides = [1, 1]} : vector<64x256xf32> to vector<8x256xf32>
    %cst_21 = arith.constant dense<0.000000e+00> : vector<8x256xf32>
    %124 = tpu.matmul %122, %6, %cst_21 {dimension_numbers = #tpu.dot_dimension_numbers<[1], [0], [0], [1], [0, 0, 1, 1], [], []>} : vector<8x64xf32>, vector<64x256xf32>, vector<8x256xf32> -> vector<8x256xf32>
    %125 = arith.addf %123, %124 : vector<8x256xf32>
    %126 = vector.extract_strided_slice %125 {offsets = [0, 0], sizes = [8, 192], strides = [1, 1]} : vector<8x256xf32> to vector<8x192xf32>
    %127 = arith.negf %126 : vector<8x192xf32>
    %128 = math.exp %127 : vector<8x192xf32>
    %cst_22 = arith.constant 1.000000e+00 : f32
    %129 = vector.broadcast %cst_22 : f32 to vector<8x192xf32>
    %130 = arith.addf %129, %128 : vector<8x192xf32>
    %131 = arith.divf %129, %130 : vector<8x192xf32>
    %132 = vector.extract_strided_slice %125 {offsets = [0, 192], sizes = [8, 64], strides = [1, 1]} : vector<8x256xf32> to vector<8x64xf32>
    %133 = math.tanh %132 : vector<8x64xf32>
    %134 = vector.extract_strided_slice %131 {offsets = [0, 64], sizes = [8, 64], strides = [1, 1]} : vector<8x192xf32> to vector<8x64xf32>
    %135 = arith.mulf %134, %119 : vector<8x64xf32>
    %136 = vector.extract_strided_slice %131 {offsets = [0, 0], sizes = [8, 64], strides = [1, 1]} : vector<8x192xf32> to vector<8x64xf32>
    %137 = arith.mulf %136, %133 : vector<8x64xf32>
    %138 = arith.addf %135, %137 : vector<8x64xf32>
    %139 = vector.extract_strided_slice %131 {offsets = [0, 128], sizes = [8, 64], strides = [1, 1]} : vector<8x192xf32> to vector<8x64xf32>
    %140 = math.tanh %138 : vector<8x64xf32>
    %141 = arith.mulf %139, %140 : vector<8x64xf32>
    %142 = vector.extract_strided_slice %5 {offsets = [56, 0], sizes = [8, 256], strides = [1, 1]} : vector<64x256xf32> to vector<8x256xf32>
    %cst_23 = arith.constant dense<0.000000e+00> : vector<8x256xf32>
    %143 = tpu.matmul %141, %6, %cst_23 {dimension_numbers = #tpu.dot_dimension_numbers<[1], [0], [0], [1], [0, 0, 1, 1], [], []>} : vector<8x64xf32>, vector<64x256xf32>, vector<8x256xf32> -> vector<8x256xf32>
    %144 = arith.addf %142, %143 : vector<8x256xf32>
    %145 = vector.extract_strided_slice %144 {offsets = [0, 0], sizes = [8, 192], strides = [1, 1]} : vector<8x256xf32> to vector<8x192xf32>
    %146 = arith.negf %145 : vector<8x192xf32>
    %147 = math.exp %146 : vector<8x192xf32>
    %cst_24 = arith.constant 1.000000e+00 : f32
    %148 = vector.broadcast %cst_24 : f32 to vector<8x192xf32>
    %149 = arith.addf %148, %147 : vector<8x192xf32>
    %150 = arith.divf %148, %149 : vector<8x192xf32>
    %151 = vector.extract_strided_slice %144 {offsets = [0, 192], sizes = [8, 64], strides = [1, 1]} : vector<8x256xf32> to vector<8x64xf32>
    %152 = math.tanh %151 : vector<8x64xf32>
    %153 = vector.extract_strided_slice %150 {offsets = [0, 64], sizes = [8, 64], strides = [1, 1]} : vector<8x192xf32> to vector<8x64xf32>
    %154 = arith.mulf %153, %138 : vector<8x64xf32>
    %155 = vector.extract_strided_slice %150 {offsets = [0, 0], sizes = [8, 64], strides = [1, 1]} : vector<8x192xf32> to vector<8x64xf32>
    %156 = arith.mulf %155, %152 : vector<8x64xf32>
    %157 = arith.addf %154, %156 : vector<8x64xf32>
    %158 = vector.extract_strided_slice %150 {offsets = [0, 128], sizes = [8, 64], strides = [1, 1]} : vector<8x192xf32> to vector<8x64xf32>
    %159 = math.tanh %157 : vector<8x64xf32>
    %160 = arith.mulf %158, %159 : vector<8x64xf32>
    %c0_25 = arith.constant 0 : index
    %c0_26 = arith.constant 0 : index
    %161 = vector.load %arg4[%c0_25, %c0_26] : memref<64x128xf32, #tpu.memory_space<vmem>>, vector<64x128xf32>
    %cst_27 = arith.constant dense<0.000000e+00> : vector<8x128xf32>
    %162 = tpu.matmul %160, %161, %cst_27 {dimension_numbers = #tpu.dot_dimension_numbers<[1], [0], [0], [1], [0, 0, 1, 1], [], []>} : vector<8x64xf32>, vector<64x128xf32>, vector<8x128xf32> -> vector<8x128xf32>
    %c0_28 = arith.constant 0 : index
    %c0_29 = arith.constant 0 : index
    %163 = vector.load %arg5[%c0_28, %c0_29] : memref<1x128xf32, #tpu.memory_space<vmem>>, vector<1x128xf32>
    %164 = vector.broadcast %163 : vector<1x128xf32> to vector<8x128xf32>
    %165 = arith.addf %162, %164 : vector<8x128xf32>
    %c0_30 = arith.constant 0 : index
    %c0_31 = arith.constant 0 : index
    %166 = vector.load %arg6[%c0_30, %c0_31] : memref<8x128xf32, #tpu.memory_space<vmem>>, vector<8x128xf32>
    tpu.vector_store %arg6[%c0_30, %c0_31], %165 {strides = array<i32>} : memref<8x128xf32, #tpu.memory_space<vmem>>, vector<8x128xf32>,
    return
  }
}

</mosaic_0001>

<llo_original>
// kernel: lstm_model_forward.1
$region0: #{lstm_model_forward.1}
  #allocation0 [shape = 'u32[]', space=smem, size = 0x4, offset = 0x4, fixed_abs, tag = 'smem constant byte address 0x4 - core index']
  #allocation1 [shape = 'u32[144,128]{1,0:T(1,128)}', space=vmem, size = 0x12000, scoped, tag = 'internal scratch']
  %s0 = inlined_call_operand.vmem [shape: f32[64,8], index: 0, kind: input, shape index: {}]
  %s1 = inlined_call_operand.vmem [shape: f32[8,256], index: 1, kind: input, shape index: {}]
  %s2 = inlined_call_operand.vmem [shape: f32[1,256], index: 2, kind: input, shape index: {}]
  %s3 = inlined_call_operand.vmem [shape: f32[64,256], index: 3, kind: input, shape index: {}]
  %s4 = inlined_call_operand.vmem [shape: f32[64,128], index: 4, kind: input, shape index: {}]
  %s5 = inlined_call_operand.vmem [shape: f32[1,128], index: 5, kind: input, shape index: {}]
  %s6 = inlined_call_operand.vmem [shape: f32[8,128], index: 6, kind: output, shape index: {}]
  %s7 = sld [smem:[#allocation0]]
  $region34: #{lstm_model_forward.1} parent=0
    _
  %s9 = ssub.s32 1, %s7
  %s10 = scalar_select 0, %s9, %s7
  // Predicated region
  $region2: #{lstm_model_forward.1} parent=0 // pred_check
    _
  $region3: #{lstm_model_forward.1} parent=0 // pred_check_branch
    %12 = sbr.rel (0) target = $region5
  $region4: #{lstm_model_forward.1} parent=0 // pred_region
    _
  $region5: #{lstm_model_forward.1} parent=0 // pred_fallthru
    _
  // Predicated region
  $region6: #{lstm_model_forward.1} parent=0 // pred_check
    _
  $region7: #{lstm_model_forward.1} parent=0 // pred_check_branch
    %14 = sbr.rel (0) target = $region9
  $region8: #{lstm_model_forward.1} parent=0 // pred_region
    _
  $region9: #{lstm_model_forward.1} parent=0 // pred_fallthru
    _
  // Predicated region
  $region10: #{lstm_model_forward.1} parent=0 // pred_check
    _
  $region11: #{lstm_model_forward.1} parent=0 // pred_check_branch
    %16 = sbr.rel (0) target = $region13
  $region12: #{lstm_model_forward.1} parent=0 // pred_region
    _
  $region13: #{lstm_model_forward.1} parent=0 // pred_fallthru
    _
  // Predicated region
  $region14: #{lstm_model_forward.1} parent=0 // pred_check
    _
  $region15: #{lstm_model_forward.1} parent=0 // pred_check_branch
    %18 = sbr.rel (0) target = $region17
  $region16: #{lstm_model_forward.1} parent=0 // pred_region
    _
  $region17: #{lstm_model_forward.1} parent=0 // pred_fallthru
    _
  // Predicated region
  $region18: #{lstm_model_forward.1} parent=0 // pred_check
    _
  $region19: #{lstm_model_forward.1} parent=0 // pred_check_branch
    %20 = sbr.rel (0) target = $region21
  $region20: #{lstm_model_forward.1} parent=0 // pred_region
    _
  $region21: #{lstm_model_forward.1} parent=0 // pred_fallthru
    _
  // Predicated region
  $region22: #{lstm_model_forward.1} parent=0 // pred_check
    _
  $region23: #{lstm_model_forward.1} parent=0 // pred_check_branch
    %22 = sbr.rel (0) target = $region25
  $region24: #{lstm_model_forward.1} parent=0 // pred_region
    _
  $region25: #{lstm_model_forward.1} parent=0 // pred_fallthru
    _
  %v23 = vld [vmem:[%s0] sm:$0xff]
  %v24 = vld [vmem:[%s0 + $0x8] sm:$0xff]
  %v25 = vld [vmem:[%s0 + $0x10] sm:$0xff]
  %v26 = vld [vmem:[%s0 + $0x18] sm:$0xff]
  %v27 = vld [vmem:[%s0 + $0x20] sm:$0xff]
  %v28 = vld [vmem:[%s0 + $0x28] sm:$0xff]
  %v29 = vld [vmem:[%s0 + $0x30] sm:$0xff]
  %v30 = vld [vmem:[%s0 + $0x38] sm:$0xff]
  %v31 = vld [vmem:[%s1] sm:$0xff]
  %v32 = vld [vmem:[%s1 + $0x8] sm:$0xff]
  %v33 = vld [vmem:[%s2] sm:$0x3]
  %v35 = vlaneseq
  %v36 = vshrl.u32 %v35, 7
  %v37 = vsub.s32 0, %v36
  %v38 = vrot.slane %v33, %v37
  %v39 = vlaneseq
  %v40 = vshrl.u32 %v39, 7
  %v41 = vsub.s32 1, %v40
  %v42 = vrot.slane %v33, %v41
  %vm45 = vcmask 64512
  %v47 = vsel %vm45, %v23, 0
  %v50 = vsel %vm45, %v24, 0
  %v53 = vsel %vm45, %v25, 0
  %v56 = vsel %vm45, %v26, 0
  %v59 = vsel %vm45, %v27, 0
  %v62 = vsel %vm45, %v28, 0
  %v65 = vsel %vm45, %v29, 0
  %v68 = vsel %vm45, %v30, 0
  %70 = vmatprep.subr.mxu0 0.0
  %71 = vmatpush1.msra.mxu0 0.0
  %72 = vmatprep.subr.mxu0 0.0
  %73 = vmatpush1.msra.mxu0 0.0
  %74 = vmatprep.subr.mxu0 0.0
  %75 = vmatpush1.msra.mxu0 0.0
  %76 = vmatprep.subr.mxu0 0.0
  %77 = vmatpush1.msra.mxu0 0.0
  %78 = vmatprep.subr.mxu0 0.0
  %79 = vmatpush1.msra.mxu0 0.0
  %80 = vmatprep.subr.mxu0 0.0
  %81 = vmatpush1.msra.mxu0 0.0
  %82 = vmatprep.subr.mxu0 0.0
  %83 = vmatpush1.msra.mxu0 0.0
  %84 = vmatprep.subr.mxu0 0.0
  %85 = vmatpush1.msra.mxu0 0.0
  %86 = vmatprep.subr.mxu0 0.0
  %87 = vmatpush1.msra.mxu0 0.0
  %88 = vmatprep.subr.mxu0 0.0
  %89 = vmatpush1.msra.mxu0 0.0
  %90 = vmatprep.subr.mxu0 0.0
  %91 = vmatpush1.msra.mxu0 0.0
  %92 = vmatprep.subr.mxu0 0.0
  %93 = vmatpush1.msra.mxu0 0.0
  %94 = vmatprep.subr.mxu0 0.0
  %95 = vmatpush1.msra.mxu0 0.0
  %96 = vmatprep.subr.mxu0 0.0
  %97 = vmatpush1.msra.mxu0 0.0
  %98 = vmatprep.subr.mxu0 0.0
  %99 = vmatpush1.msra.mxu0 0.0
  %100 = vmatprep.subr.mxu0 %v32
  %101 = vmatpush1.msra.mxu0 %v31
  %102 = vmatprep.subr.mxu0 0.0
  %103 = vmatpush2.msra.mxu0 0.0
  %104 = vmatprep.subr.mxu0 0.0
  %105 = vmatpush2.msra.mxu0 0.0
  %106 = vmatprep.subr.mxu0 0.0
  %107 = vmatpush2.msra.mxu0 0.0
  %108 = vmatprep.subr.mxu0 0.0
  %109 = vmatpush2.msra.mxu0 0.0
  %110 = vmatprep.subr.mxu0 0.0
  %111 = vmatpush2.msra.mxu0 0.0
  %112 = vmatprep.subr.mxu0 0.0
  %113 = vmatpush2.msra.mxu0 0.0
  %114 = vmatprep.subr.mxu0 0.0
  %115 = vmatpush2.msra.mxu0 0.0
  %116 = vmatprep.subr.mxu0 0.0
  %117 = vmatpush2.msra.mxu0 0.0
  %118 = vmatprep.subr.mxu0 0.0
  %119 = vmatpush2.msra.mxu0 0.0
  %120 = vmatprep.subr.mxu0 0.0
  %121 = vmatpush2.msra.mxu0 0.0
  %122 = vmatprep.subr.mxu0 0.0
  %123 = vmatpush2.msra.mxu0 0.0
  %124 = vmatprep.subr.mxu0 0.0
  %125 = vmatpush2.msra.mxu0 0.0
  %126 = vmatprep.subr.mxu0 0.0
  %127 = vmatpush2.msra.mxu0 0.0
  %128 = vmatprep.subr.mxu0 0.0
  %129 = vmatpush2.msra.mxu0 0.0
  %130 = vmatprep.subr.mxu0 0.0
  %131 = vmatpush2.msra.mxu0 0.0
  %132 = vmatprep.subr.mxu0 0.0
  %133 = vmatpush2.msra.mxu0 0.0
  %134 = vmatprep.mubr.f32.mxu0 0.0
  %135 = vmatmul.mubr.f32.gmra.mxu0 %v47
  %v136 = vpop.f32.mrf.mxu0
  %v137 = vadd.f32 %v38, %v136
  %v138 = vpop.f32.mrf.mxu0
  %v139 = vadd.f32 %v42, %v138
  %140 = vmatprep.mubr.f32.mxu0 0.0
  %141 = vmatmul.mubr.f32.gmra.mxu0 %v50
  %v142 = vpop.f32.mrf.mxu0
  %v143 = vadd.f32 %v38, %v142
  %v144 = vpop.f32.mrf.mxu0
  %v145 = vadd.f32 %v42, %v144
  %146 = vmatprep.mubr.f32.mxu0 0.0
  %147 = vmatmul.mubr.f32.gmra.mxu0 %v53
  %v148 = vpop.f32.mrf.mxu0
  %v149 = vadd.f32 %v38, %v148
  %v150 = vpop.f32.mrf.mxu0
  %v151 = vadd.f32 %v42, %v150
  %152 = vmatprep.mubr.f32.mxu0 0.0
  %153 = vmatmul.mubr.f32.gmra.mxu0 %v56
  %v154 = vpop.f32.mrf.mxu0
  %v155 = vadd.f32 %v38, %v154
  %v156 = vpop.f32.mrf.mxu0
  %v157 = vadd.f32 %v42, %v156
  %158 = vmatprep.mubr.f32.mxu0 0.0
  %159 = vmatmul.mubr.f32.gmra.mxu0 %v59
  %v160 = vpop.f32.mrf.mxu0
  %v161 = vadd.f32 %v38, %v160
  %v162 = vpop.f32.mrf.mxu0
  %v163 = vadd.f32 %v42, %v162
  %164 = vmatprep.mubr.f32.mxu0 0.0
  %165 = vmatmul.mubr.f32.gmra.mxu0 %v62
  %v166 = vpop.f32.mrf.mxu0
  %v167 = vadd.f32 %v38, %v166
  %v168 = vpop.f32.mrf.mxu0
  %v169 = vadd.f32 %v42, %v168
  %170 = vmatprep.mubr.f32.mxu0 0.0
  %171 = vmatmul.mubr.f32.gmra.mxu0 %v65
  %v172 = vpop.f32.mrf.mxu0
  %v173 = vadd.f32 %v38, %v172
  %v174 = vpop.f32.mrf.mxu0
  %v175 = vadd.f32 %v42, %v174
  %176 = vmatprep.mubr.f32.mxu0 0.0
  %177 = vmatmul.mubr.f32.gmra.mxu0 %v68
  %v178 = vpop.f32.mrf.mxu0
  %v179 = vadd.f32 %v38, %v178
  %v180 = vpop.f32.mrf.mxu0
  %v181 = vadd.f32 %v42, %v180
  %182 = vdwg.mxu0
  %v183 = vld [vmem:[%s3] sm:$0xff]
  %v184 = vld [vmem:[%s3 + $0x8] sm:$0xff]
  %v185 = vld [vmem:[%s3 + $0x10] sm:$0xff]
  %v186 = vld [vmem:[%s3 + $0x18] sm:$0xff]
  %v187 = vld [vmem:[%s3 + $0x20] sm:$0xff]
  %v188 = vld [vmem:[%s3 + $0x28] sm:$0xff]
  %v189 = vld [vmem:[%s3 + $0x30] sm:$0xff]
  %v190 = vld [vmem:[%s3 + $0x38] sm:$0xff]
  %v191 = vld [vmem:[%s3 + $0x40] sm:$0xff]
  %v192 = vld [vmem:[%s3 + $0x48] sm:$0xff]
  %v193 = vld [vmem:[%s3 + $0x50] sm:$0xff]
  %v194 = vld [vmem:[%s3 + $0x58] sm:$0xff]
  %v195 = vld [vmem:[%s3 + $0x60] sm:$0xff]
  %v196 = vld [vmem:[%s3 + $0x68] sm:$0xff]
  %v197 = vld [vmem:[%s3 + $0x70] sm:$0xff]
  %v198 = vld [vmem:[%s3 + $0x78] sm:$0xff]
  %vm199 = vcmask 523264
  %v201 = vsel %vm199, 0.0, 0
  %203 = vmatprep.subr.mxu0 0.0
  %204 = vmatpush1.msra.mxu0 0.0
  %205 = vmatprep.subr.mxu0 0.0
  %206 = vmatpush1.msra.mxu0 0.0
  %207 = vmatprep.subr.mxu0 0.0
  %208 = vmatpush1.msra.mxu0 0.0
  %209 = vmatprep.subr.mxu0 0.0
  %210 = vmatpush1.msra.mxu0 0.0
  %211 = vmatprep.subr.mxu0 0.0
  %212 = vmatpush1.msra.mxu0 0.0
  %213 = vmatprep.subr.mxu0 0.0
  %214 = vmatpush1.msra.mxu0 0.0
  %215 = vmatprep.subr.mxu0 0.0
  %216 = vmatpush1.msra.mxu0 0.0
  %217 = vmatprep.subr.mxu0 0.0
  %218 = vmatpush1.msra.mxu0 0.0
  %219 = vmatprep.subr.mxu0 %v198
  %220 = vmatpush1.msra.mxu0 %v197
  %221 = vmatprep.subr.mxu0 %v196
  %222 = vmatpush1.msra.mxu0 %v195
  %223 = vmatprep.subr.mxu0 %v194
  %224 = vmatpush1.msra.mxu0 %v193
  %225 = vmatprep.subr.mxu0 %v192
  %226 = vmatpush1.msra.mxu0 %v191
  %227 = vmatprep.subr.mxu0 %v190
  %228 = vmatpush1.msra.mxu0 %v189
  %229 = vmatprep.subr.mxu0 %v188
  %230 = vmatpush1.msra.mxu0 %v187
  %231 = vmatprep.subr.mxu0 %v186
  %232 = vmatpush1.msra.mxu0 %v185
  %233 = vmatprep.subr.mxu0 %v184
  %234 = vmatpush1.msra.mxu0 %v183
  %235 = vmatprep.subr.mxu0 0.0
  %236 = vmatpush2.msra.mxu0 0.0
  %237 = vmatprep.subr.mxu0 0.0
  %238 = vmatpush2.msra.mxu0 0.0
  %239 = vmatprep.subr.mxu0 0.0
  %240 = vmatpush2.msra.mxu0 0.0
  %241 = vmatprep.subr.mxu0 0.0
  %242 = vmatpush2.msra.mxu0 0.0
  %243 = vmatprep.subr.mxu0 0.0
  %244 = vmatpush2.msra.mxu0 0.0
  %245 = vmatprep.subr.mxu0 0.0
  %246 = vmatpush2.msra.mxu0 0.0
  %247 = vmatprep.subr.mxu0 0.0
  %248 = vmatpush2.msra.mxu0 0.0
  %249 = vmatprep.subr.mxu0 0.0
  %250 = vmatpush2.msra.mxu0 0.0
  %251 = vmatprep.subr.mxu0 0.0
  %252 = vmatpush2.msra.mxu0 0.0
  %253 = vmatprep.subr.mxu0 0.0
  %254 = vmatpush2.msra.mxu0 0.0
  %255 = vmatprep.subr.mxu0 0.0
  %256 = vmatpush2.msra.mxu0 0.0
  %257 = vmatprep.subr.mxu0 0.0
  %258 = vmatpush2.msra.mxu0 0.0
  %259 = vmatprep.subr.mxu0 0.0
  %260 = vmatpush2.msra.mxu0 0.0
  %261 = vmatprep.subr.mxu0 0.0
  %262 = vmatpush2.msra.mxu0 0.0
  %263 = vmatprep.subr.mxu0 0.0
  %264 = vmatpush2.msra.mxu0 0.0
  %265 = vmatprep.subr.mxu0 0.0
  %266 = vmatpush2.msra.mxu0 0.0
  %267 = vmatprep.mubr.f32.mxu0 0.0
  %268 = vmatmul.mubr.f32.gmra.mxu0 %v201
  %v269 = vpop.f32.mrf.mxu0
  %v270 = vadd.f32 0.0, %v269
  %v271 = vpop.f32.mrf.mxu0
  %v272 = vadd.f32 0.0, %v271
  %273 = vdwg.mxu0
  %v274 = vadd.f32 %v137, %v270
  %v275 = vadd.f32 %v139, %v272
  %v276 = vxor.u32 %v274, 2147483648
  %v277 = vxor.u32 %v275, 2147483648
  %v278 = vmul.f32 %v276, 1.442695
  %v279 = vpow.pop %v278
  %v280 = vmul.f32 %v277, 1.442695
  %v281 = vpow.pop %v280
  %v282 = vadd.f32 %v279, 1.0
  %v283 = vadd.f32 %v281, 1.0
  %v284 = vrcp.pop %v282
  %v285 = vmul.f32 1.0, %v284
  %v286 = vrcp.pop %v283
  %v287 = vmul.f32 1.0, %v286
  %v288 = vtanh.pop %v275
  %v289 = vmul.f32 %v285, 0.0
  %291 = vrot.lane.b32.xlu0 %v288, 64
  %v292 = vpop.permute.xlu0 %291
  %v294 = vmul.f32 %v285, %v292
  %296 = vrot.lane.b32.xlu0 %v294, 64
  %v297 = vpop.permute.xlu0 %296
  %v299 = vadd.f32 %v289, %v297
  %v300 = vtanh.pop %v299
  %302 = vrot.lane.b32.xlu0 %v300, 64
  %v303 = vpop.permute.xlu0 %302
  %v305 = vmul.f32 %v287, %v303
  %v307 = vsel %vm199, %v305, 0
  %309 = vmatprep.subr.mxu0 0.0
  %310 = vmatpush1.msra.mxu0 0.0
  %311 = vmatprep.subr.mxu0 0.0
  %312 = vmatpush1.msra.mxu0 0.0
  %313 = vmatprep.subr.mxu0 0.0
  %314 = vmatpush1.msra.mxu0 0.0
  %315 = vmatprep.subr.mxu0 0.0
  %316 = vmatpush1.msra.mxu0 0.0
  %317 = vmatprep.subr.mxu0 0.0
  %318 = vmatpush1.msra.mxu0 0.0
  %319 = vmatprep.subr.mxu0 0.0
  %320 = vmatpush1.msra.mxu0 0.0
  %321 = vmatprep.subr.mxu0 0.0
  %322 = vmatpush1.msra.mxu0 0.0
  %323 = vmatprep.subr.mxu0 0.0
  %324 = vmatpush1.msra.mxu0 0.0
  %325 = vmatprep.subr.mxu0 %v198
  %326 = vmatpush1.msra.mxu0 %v197
  %327 = vmatprep.subr.mxu0 %v196
  %328 = vmatpush1.msra.mxu0 %v195
  %329 = vmatprep.subr.mxu0 %v194
  %330 = vmatpush1.msra.mxu0 %v193
  %331 = vmatprep.subr.mxu0 %v192
  %332 = vmatpush1.msra.mxu0 %v191
  %333 = vmatprep.subr.mxu0 %v190
  %334 = vmatpush1.msra.mxu0 %v189
  %335 = vmatprep.subr.mxu0 %v188
  %336 = vmatpush1.msra.mxu0 %v187
  %337 = vmatprep.subr.mxu0 %v186
  %338 = vmatpush1.msra.mxu0 %v185
  %339 = vmatprep.subr.mxu0 %v184
  %340 = vmatpush1.msra.mxu0 %v183
  %341 = vmatprep.subr.mxu0 0.0
  %342 = vmatpush2.msra.mxu0 0.0
  %343 = vmatprep.subr.mxu0 0.0
  %344 = vmatpush2.msra.mxu0 0.0
  %345 = vmatprep.subr.mxu0 0.0
  %346 = vmatpush2.msra.mxu0 0.0
  %347 = vmatprep.subr.mxu0 0.0
  %348 = vmatpush2.msra.mxu0 0.0
  %349 = vmatprep.subr.mxu0 0.0
  %350 = vmatpush2.msra.mxu0 0.0
  %351 = vmatprep.subr.mxu0 0.0
  %352 = vmatpush2.msra.mxu0 0.0
  %353 = vmatprep.subr.mxu0 0.0
  %354 = vmatpush2.msra.mxu0 0.0
  %355 = vmatprep.subr.mxu0 0.0
  %356 = vmatpush2.msra.mxu0 0.0
  %357 = vmatprep.subr.mxu0 0.0
  %358 = vmatpush2.msra.mxu0 0.0
  %359 = vmatprep.subr.mxu0 0.0
  %360 = vmatpush2.msra.mxu0 0.0
  %361 = vmatprep.subr.mxu0 0.0
  %362 = vmatpush2.msra.mxu0 0.0
  %363 = vmatprep.subr.mxu0 0.0
  %364 = vmatpush2.msra.mxu0 0.0
  %365 = vmatprep.subr.mxu0 0.0
  %366 = vmatpush2.msra.mxu0 0.0
  %367 = vmatprep.subr.mxu0 0.0
  %368 = vmatpush2.msra.mxu0 0.0
  %369 = vmatprep.subr.mxu0 0.0
  %370 = vmatpush2.msra.mxu0 0.0
  %371 = vmatprep.subr.mxu0 0.0
  %372 = vmatpush2.msra.mxu0 0.0
  %373 = vmatprep.mubr.f32.mxu0 0.0
  %374 = vmatmul.mubr.f32.gmra.mxu0 %v307
  %v375 = vpop.f32.mrf.mxu0
  %v376 = vadd.f32 0.0, %v375
  %v377 = vpop.f32.mrf.mxu0
  %v378 = vadd.f32 0.0, %v377
  %379 = vdwg.mxu0
  %v380 = vadd.f32 %v143, %v376
  %v381 = vadd.f32 %v145, %v378
  %v382 = vxor.u32 %v380, 2147483648
  %v383 = vxor.u32 %v381, 2147483648
  %v384 = vmul.f32 %v382, 1.442695
  %v385 = vpow.pop %v384
  %v386 = vmul.f32 %v383, 1.442695
  %v387 = vpow.pop %v386
  %v388 = vadd.f32 %v385, 1.0
  %v389 = vadd.f32 %v387, 1.0
  %v390 = vrcp.pop %v388
  %v391 = vmul.f32 1.0, %v390
  %v392 = vrcp.pop %v389
  %v393 = vmul.f32 1.0, %v392
  %v394 = vtanh.pop %v381
  %v395 = vmul.f32 %v391, %v299
  %397 = vrot.lane.b32.xlu0 %v394, 64
  %v398 = vpop.permute.xlu0 %397
  %v400 = vmul.f32 %v391, %v398
  %402 = vrot.lane.b32.xlu0 %v400, 64
  %v403 = vpop.permute.xlu0 %402
  %v405 = vadd.f32 %v395, %v403
  %v406 = vtanh.pop %v405
  %408 = vrot.lane.b32.xlu0 %v406, 64
  %v409 = vpop.permute.xlu0 %408
  %v411 = vmul.f32 %v393, %v409
  %v413 = vsel %vm199, %v411, 0
  %415 = vmatprep.subr.mxu0 0.0
  %416 = vmatpush1.msra.mxu0 0.0
  %417 = vmatprep.subr.mxu0 0.0
  %418 = vmatpush1.msra.mxu0 0.0
  %419 = vmatprep.subr.mxu0 0.0
  %420 = vmatpush1.msra.mxu0 0.0
  %421 = vmatprep.subr.mxu0 0.0
  %422 = vmatpush1.msra.mxu0 0.0
  %423 = vmatprep.subr.mxu0 0.0
  %424 = vmatpush1.msra.mxu0 0.0
  %425 = vmatprep.subr.mxu0 0.0
  %426 = vmatpush1.msra.mxu0 0.0
  %427 = vmatprep.subr.mxu0 0.0
  %428 = vmatpush1.msra.mxu0 0.0
  %429 = vmatprep.subr.mxu0 0.0
  %430 = vmatpush1.msra.mxu0 0.0
  %431 = vmatprep.subr.mxu0 %v198
  %432 = vmatpush1.msra.mxu0 %v197
  %433 = vmatprep.subr.mxu0 %v196
  %434 = vmatpush1.msra.mxu0 %v195
  %435 = vmatprep.subr.mxu0 %v194
  %436 = vmatpush1.msra.mxu0 %v193
  %437 = vmatprep.subr.mxu0 %v192
  %438 = vmatpush1.msra.mxu0 %v191
  %439 = vmatprep.subr.mxu0 %v190
  %440 = vmatpush1.msra.mxu0 %v189
  %441 = vmatprep.subr.mxu0 %v188
  %442 = vmatpush1.msra.mxu0 %v187
  %443 = vmatprep.subr.mxu0 %v186
  %444 = vmatpush1.msra.mxu0 %v185
  %445 = vmatprep.subr.mxu0 %v184
  %446 = vmatpush1.msra.mxu0 %v183
  %447 = vmatprep.subr.mxu0 0.0
  %448 = vmatpush2.msra.mxu0 0.0
  %449 = vmatprep.subr.mxu0 0.0
  %450 = vmatpush2.msra.mxu0 0.0
  %451 = vmatprep.subr.mxu0 0.0
  %452 = vmatpush2.msra.mxu0 0.0
  %453 = vmatprep.subr.mxu0 0.0
  %454 = vmatpush2.msra.mxu0 0.0
  %455 = vmatprep.subr.mxu0 0.0
  %456 = vmatpush2.msra.mxu0 0.0
  %457 = vmatprep.subr.mxu0 0.0
  %458 = vmatpush2.msra.mxu0 0.0
  %459 = vmatprep.subr.mxu0 0.0
  %460 = vmatpush2.msra.mxu0 0.0
  %461 = vmatprep.subr.mxu0 0.0
  %462 = vmatpush2.msra.mxu0 0.0
  %463 = vmatprep.subr.mxu0 0.0
  %464 = vmatpush2.msra.mxu0 0.0
  %465 = vmatprep.subr.mxu0 0.0
  %466 = vmatpush2.msra.mxu0 0.0
  %467 = vmatprep.subr.mxu0 0.0
  %468 = vmatpush2.msra.mxu0 0.0
  %469 = vmatprep.subr.mxu0 0.0
  %470 = vmatpush2.msra.mxu0 0.0
  %471 = vmatprep.subr.mxu0 0.0
  %472 = vmatpush2.msra.mxu0 0.0
  %473 = vmatprep.subr.mxu0 0.0
  %474 = vmatpush2.msra.mxu0 0.0
  %475 = vmatprep.subr.mxu0 0.0
  %476 = vmatpush2.msra.mxu0 0.0
  %477 = vmatprep.subr.mxu0 0.0
  %478 = vmatpush2.msra.mxu0 0.0
  %479 = vmatprep.mubr.f32.mxu0 0.0
  %480 = vmatmul.mubr.f32.gmra.mxu0 %v413
  %v481 = vpop.f32.mrf.mxu0
  %v482 = vadd.f32 0.0, %v481
  %v483 = vpop.f32.mrf.mxu0
  %v484 = vadd.f32 0.0, %v483
  %485 = vdwg.mxu0
  %v486 = vadd.f32 %v149, %v482
  %v487 = vadd.f32 %v151, %v484
  %v488 = vxor.u32 %v486, 2147483648
  %v489 = vxor.u32 %v487, 2147483648
  %v490 = vmul.f32 %v488, 1.442695
  %v491 = vpow.pop %v490
  %v492 = vmul.f32 %v489, 1.442695
  %v493 = vpow.pop %v492
  %v494 = vadd.f32 %v491, 1.0
  %v495 = vadd.f32 %v493, 1.0
  %v496 = vrcp.pop %v494
  %v497 = vmul.f32 1.0, %v496
  %v498 = vrcp.pop %v495
  %v499 = vmul.f32 1.0, %v498
  %v500 = vtanh.pop %v487
  %v501 = vmul.f32 %v497, %v405
  %503 = vrot.lane.b32.xlu0 %v500, 64
  %v504 = vpop.permute.xlu0 %503
  %v506 = vmul.f32 %v497, %v504
  %508 = vrot.lane.b32.xlu0 %v506, 64
  %v509 = vpop.permute.xlu0 %508
  %v511 = vadd.f32 %v501, %v509
  %v512 = vtanh.pop %v511
  %514 = vrot.lane.b32.xlu0 %v512, 64
  %v515 = vpop.permute.xlu0 %514
  %v517 = vmul.f32 %v499, %v515
  %v519 = vsel %vm199, %v517, 0
  %521 = vmatprep.subr.mxu0 0.0
  %522 = vmatpush1.msra.mxu0 0.0
  %523 = vmatprep.subr.mxu0 0.0
  %524 = vmatpush1.msra.mxu0 0.0
  %525 = vmatprep.subr.mxu0 0.0
  %526 = vmatpush1.msra.mxu0 0.0
  %527 = vmatprep.subr.mxu0 0.0
  %528 = vmatpush1.msra.mxu0 0.0
  %529 = vmatprep.subr.mxu0 0.0
  %530 = vmatpush1.msra.mxu0 0.0
  %531 = vmatprep.subr.mxu0 0.0
  %532 = vmatpush1.msra.mxu0 0.0
  %533 = vmatprep.subr.mxu0 0.0
  %534 = vmatpush1.msra.mxu0 0.0
  %535 = vmatprep.subr.mxu0 0.0
  %536 = vmatpush1.msra.mxu0 0.0
  %537 = vmatprep.subr.mxu0 %v198
  %538 = vmatpush1.msra.mxu0 %v197
  %539 = vmatprep.subr.mxu0 %v196
  %540 = vmatpush1.msra.mxu0 %v195
  %541 = vmatprep.subr.mxu0 %v194
  %542 = vmatpush1.msra.mxu0 %v193
  %543 = vmatprep.subr.mxu0 %v192
  %544 = vmatpush1.msra.mxu0 %v191
  %545 = vmatprep.subr.mxu0 %v190
  %546 = vmatpush1.msra.mxu0 %v189
  %547 = vmatprep.subr.mxu0 %v188
  %548 = vmatpush1.msra.mxu0 %v187
  %549 = vmatprep.subr.mxu0 %v186
  %550 = vmatpush1.msra.mxu0 %v185
  %551 = vmatprep.subr.mxu0 %v184
  %552 = vmatpush1.msra.mxu0 %v183
  %553 = vmatprep.subr.mxu0 0.0
  %554 = vmatpush2.msra.mxu0 0.0
  %555 = vmatprep.subr.mxu0 0.0
  %556 = vmatpush2.msra.mxu0 0.0
  %557 = vmatprep.subr.mxu0 0.0
  %558 = vmatpush2.msra.mxu0 0.0
  %559 = vmatprep.subr.mxu0 0.0
  %560 = vmatpush2.msra.mxu0 0.0
  %561 = vmatprep.subr.mxu0 0.0
  %562 = vmatpush2.msra.mxu0 0.0
  %563 = vmatprep.subr.mxu0 0.0
  %564 = vmatpush2.msra.mxu0 0.0
  %565 = vmatprep.subr.mxu0 0.0
  %566 = vmatpush2.msra.mxu0 0.0
  %567 = vmatprep.subr.mxu0 0.0
  %568 = vmatpush2.msra.mxu0 0.0
  %569 = vmatprep.subr.mxu0 0.0
  %570 = vmatpush2.msra.mxu0 0.0
  %571 = vmatprep.subr.mxu0 0.0
  %572 = vmatpush2.msra.mxu0 0.0
  %573 = vmatprep.subr.mxu0 0.0
  %574 = vmatpush2.msra.mxu0 0.0
  %575 = vmatprep.subr.mxu0 0.0
  %576 = vmatpush2.msra.mxu0 0.0
  %577 = vmatprep.subr.mxu0 0.0
  %578 = vmatpush2.msra.mxu0 0.0
  %579 = vmatprep.subr.mxu0 0.0
  %580 = vmatpush2.msra.mxu0 0.0
  %581 = vmatprep.subr.mxu0 0.0
  %582 = vmatpush2.msra.mxu0 0.0
  %583 = vmatprep.subr.mxu0 0.0
  %584 = vmatpush2.msra.mxu0 0.0
  %585 = vmatprep.mubr.f32.mxu0 0.0
  %586 = vmatmul.mubr.f32.gmra.mxu0 %v519
  %v587 = vpop.f32.mrf.mxu0
  %v588 = vadd.f32 0.0, %v587
  %v589 = vpop.f32.mrf.mxu0
  %v590 = vadd.f32 0.0, %v589
  %591 = vdwg.mxu0
  %v592 = vadd.f32 %v155, %v588
  %v593 = vadd.f32 %v157, %v590
  %v594 = vxor.u32 %v592, 2147483648
  %v595 = vxor.u32 %v593, 2147483648
  %v596 = vmul.f32 %v594, 1.442695
  %v597 = vpow.pop %v596
  %v598 = vmul.f32 %v595, 1.442695
  %v599 = vpow.pop %v598
  %v600 = vadd.f32 %v597, 1.0
  %v601 = vadd.f32 %v599, 1.0
  %v602 = vrcp.pop %v600
  %v603 = vmul.f32 1.0, %v602
  %v604 = vrcp.pop %v601
  %v605 = vmul.f32 1.0, %v604
  %v606 = vtanh.pop %v593
  %v607 = vmul.f32 %v603, %v511
  %609 = vrot.lane.b32.xlu0 %v606, 64
  %v610 = vpop.permute.xlu0 %609
  %v612 = vmul.f32 %v603, %v610
  %614 = vrot.lane.b32.xlu0 %v612, 64
  %v615 = vpop.permute.xlu0 %614
  %v617 = vadd.f32 %v607, %v615
  %v618 = vtanh.pop %v617
  %620 = vrot.lane.b32.xlu0 %v618, 64
  %v621 = vpop.permute.xlu0 %620
  %v623 = vmul.f32 %v605, %v621
  %v625 = vsel %vm199, %v623, 0
  %627 = vmatprep.subr.mxu0 0.0
  %628 = vmatpush1.msra.mxu0 0.0
  %629 = vmatprep.subr.mxu0 0.0
  %630 = vmatpush1.msra.mxu0 0.0
  %631 = vmatprep.subr.mxu0 0.0
  %632 = vmatpush1.msra.mxu0 0.0
  %633 = vmatprep.subr.mxu0 0.0
  %634 = vmatpush1.msra.mxu0 0.0
  %635 = vmatprep.subr.mxu0 0.0
  %636 = vmatpush1.msra.mxu0 0.0
  %637 = vmatprep.subr.mxu0 0.0
  %638 = vmatpush1.msra.mxu0 0.0
  %639 = vmatprep.subr.mxu0 0.0
  %640 = vmatpush1.msra.mxu0 0.0
  %641 = vmatprep.subr.mxu0 0.0
  %642 = vmatpush1.msra.mxu0 0.0
  %643 = vmatprep.subr.mxu0 %v198
  %644 = vmatpush1.msra.mxu0 %v197
  %645 = vmatprep.subr.mxu0 %v196
  %646 = vmatpush1.msra.mxu0 %v195
  %647 = vmatprep.subr.mxu0 %v194
  %648 = vmatpush1.msra.mxu0 %v193
  %649 = vmatprep.subr.mxu0 %v192
  %650 = vmatpush1.msra.mxu0 %v191
  %651 = vmatprep.subr.mxu0 %v190
  %652 = vmatpush1.msra.mxu0 %v189
  %653 = vmatprep.subr.mxu0 %v188
  %654 = vmatpush1.msra.mxu0 %v187
  %655 = vmatprep.subr.mxu0 %v186
  %656 = vmatpush1.msra.mxu0 %v185
  %657 = vmatprep.subr.mxu0 %v184
  %658 = vmatpush1.msra.mxu0 %v183
  %659 = vmatprep.subr.mxu0 0.0
  %660 = vmatpush2.msra.mxu0 0.0
  %661 = vmatprep.subr.mxu0 0.0
  %662 = vmatpush2.msra.mxu0 0.0
  %663 = vmatprep.subr.mxu0 0.0
  %664 = vmatpush2.msra.mxu0 0.0
  %665 = vmatprep.subr.mxu0 0.0
  %666 = vmatpush2.msra.mxu0 0.0
  %667 = vmatprep.subr.mxu0 0.0
  %668 = vmatpush2.msra.mxu0 0.0
  %669 = vmatprep.subr.mxu0 0.0
  %670 = vmatpush2.msra.mxu0 0.0
  %671 = vmatprep.subr.mxu0 0.0
  %672 = vmatpush2.msra.mxu0 0.0
  %673 = vmatprep.subr.mxu0 0.0
  %674 = vmatpush2.msra.mxu0 0.0
  %675 = vmatprep.subr.mxu0 0.0
  %676 = vmatpush2.msra.mxu0 0.0
  %677 = vmatprep.subr.mxu0 0.0
  %678 = vmatpush2.msra.mxu0 0.0
  %679 = vmatprep.subr.mxu0 0.0
  %680 = vmatpush2.msra.mxu0 0.0
  %681 = vmatprep.subr.mxu0 0.0
  %682 = vmatpush2.msra.mxu0 0.0
  %683 = vmatprep.subr.mxu0 0.0
  %684 = vmatpush2.msra.mxu0 0.0
  %685 = vmatprep.subr.mxu0 0.0
  %686 = vmatpush2.msra.mxu0 0.0
  %687 = vmatprep.subr.mxu0 0.0
  %688 = vmatpush2.msra.mxu0 0.0
  %689 = vmatprep.subr.mxu0 0.0
  %690 = vmatpush2.msra.mxu0 0.0
  %691 = vmatprep.mubr.f32.mxu0 0.0
  %692 = vmatmul.mubr.f32.gmra.mxu0 %v625
  %v693 = vpop.f32.mrf.mxu0
  %v694 = vadd.f32 0.0, %v693
  %v695 = vpop.f32.mrf.mxu0
  %v696 = vadd.f32 0.0, %v695
  %697 = vdwg.mxu0
  %v698 = vadd.f32 %v161, %v694
  %v699 = vadd.f32 %v163, %v696
  %v700 = vxor.u32 %v698, 2147483648
  %v701 = vxor.u32 %v699, 2147483648
  %v702 = vmul.f32 %v700, 1.442695
  %v703 = vpow.pop %v702
  %v704 = vmul.f32 %v701, 1.442695
  %v705 = vpow.pop %v704
  %v706 = vadd.f32 %v703, 1.0
  %v707 = vadd.f32 %v705, 1.0
  %v708 = vrcp.pop %v706
  %v709 = vmul.f32 1.0, %v708
  %v710 = vrcp.pop %v707
  %v711 = vmul.f32 1.0, %v710
  %v712 = vtanh.pop %v699
  %v713 = vmul.f32 %v709, %v617
  %715 = vrot.lane.b32.xlu0 %v712, 64
  %v716 = vpop.permute.xlu0 %715
  %v718 = vmul.f32 %v709, %v716
  %720 = vrot.lane.b32.xlu0 %v718, 64
  %v721 = vpop.permute.xlu0 %720
  %v723 = vadd.f32 %v713, %v721
  %v724 = vtanh.pop %v723
  %726 = vrot.lane.b32.xlu0 %v724, 64
  %v727 = vpop.permute.xlu0 %726
  %v729 = vmul.f32 %v711, %v727
  %v731 = vsel %vm199, %v729, 0
  %733 = vmatprep.subr.mxu0 0.0
  %734 = vmatpush1.msra.mxu0 0.0
  %735 = vmatprep.subr.mxu0 0.0
  %736 = vmatpush1.msra.mxu0 0.0
  %737 = vmatprep.subr.mxu0 0.0
  %738 = vmatpush1.msra.mxu0 0.0
  %739 = vmatprep.subr.mxu0 0.0
  %740 = vmatpush1.msra.mxu0 0.0
  %741 = vmatprep.subr.mxu0 0.0
  %742 = vmatpush1.msra.mxu0 0.0
  %743 = vmatprep.subr.mxu0 0.0
  %744 = vmatpush1.msra.mxu0 0.0
  %745 = vmatprep.subr.mxu0 0.0
  %746 = vmatpush1.msra.mxu0 0.0
  %747 = vmatprep.subr.mxu0 0.0
  %748 = vmatpush1.msra.mxu0 0.0
  %749 = vmatprep.subr.mxu0 %v198
  %750 = vmatpush1.msra.mxu0 %v197
  %751 = vmatprep.subr.mxu0 %v196
  %752 = vmatpush1.msra.mxu0 %v195
  %753 = vmatprep.subr.mxu0 %v194
  %754 = vmatpush1.msra.mxu0 %v193
  %755 = vmatprep.subr.mxu0 %v192
  %756 = vmatpush1.msra.mxu0 %v191
  %757 = vmatprep.subr.mxu0 %v190
  %758 = vmatpush1.msra.mxu0 %v189
  %759 = vmatprep.subr.mxu0 %v188
  %760 = vmatpush1.msra.mxu0 %v187
  %761 = vmatprep.subr.mxu0 %v186
  %762 = vmatpush1.msra.mxu0 %v185
  %763 = vmatprep.subr.mxu0 %v184
  %764 = vmatpush1.msra.mxu0 %v183
  %765 = vmatprep.subr.mxu0 0.0
  %766 = vmatpush2.msra.mxu0 0.0
  %767 = vmatprep.subr.mxu0 0.0
  %768 = vmatpush2.msra.mxu0 0.0
  %769 = vmatprep.subr.mxu0 0.0
  %770 = vmatpush2.msra.mxu0 0.0
  %771 = vmatprep.subr.mxu0 0.0
  %772 = vmatpush2.msra.mxu0 0.0
  %773 = vmatprep.subr.mxu0 0.0
  %774 = vmatpush2.msra.mxu0 0.0
  %775 = vmatprep.subr.mxu0 0.0
  %776 = vmatpush2.msra.mxu0 0.0
  %777 = vmatprep.subr.mxu0 0.0
  %778 = vmatpush2.msra.mxu0 0.0
  %779 = vmatprep.subr.mxu0 0.0
  %780 = vmatpush2.msra.mxu0 0.0
  %781 = vmatprep.subr.mxu0 0.0
  %782 = vmatpush2.msra.mxu0 0.0
  %783 = vmatprep.subr.mxu0 0.0
  %784 = vmatpush2.msra.mxu0 0.0
  %785 = vmatprep.subr.mxu0 0.0
  %786 = vmatpush2.msra.mxu0 0.0
  %787 = vmatprep.subr.mxu0 0.0
  %788 = vmatpush2.msra.mxu0 0.0
  %789 = vmatprep.subr.mxu0 0.0
  %790 = vmatpush2.msra.mxu0 0.0
  %791 = vmatprep.subr.mxu0 0.0
  %792 = vmatpush2.msra.mxu0 0.0
  %793 = vmatprep.subr.mxu0 0.0
  %794 = vmatpush2.msra.mxu0 0.0
  %795 = vmatprep.subr.mxu0 0.0
  %796 = vmatpush2.msra.mxu0 0.0
  %797 = vmatprep.mubr.f32.mxu0 0.0
  %798 = vmatmul.mubr.f32.gmra.mxu0 %v731
  %v799 = vpop.f32.mrf.mxu0
  %v800 = vadd.f32 0.0, %v799
  %v801 = vpop.f32.mrf.mxu0
  %v802 = vadd.f32 0.0, %v801
  %803 = vdwg.mxu0
  %v804 = vadd.f32 %v167, %v800
  %v805 = vadd.f32 %v169, %v802
  %v806 = vxor.u32 %v804, 2147483648
  %v807 = vxor.u32 %v805, 2147483648
  %v808 = vmul.f32 %v806, 1.442695
  %v809 = vpow.pop %v808
  %v810 = vmul.f32 %v807, 1.442695
  %v811 = vpow.pop %v810
  %v812 = vadd.f32 %v809, 1.0
  %v813 = vadd.f32 %v811, 1.0
  %v814 = vrcp.pop %v812
  %v815 = vmul.f32 1.0, %v814
  %v816 = vrcp.pop %v813
  %v817 = vmul.f32 1.0, %v816
  %v818 = vtanh.pop %v805
  %v819 = vmul.f32 %v815, %v723
  %821 = vrot.lane.b32.xlu0 %v818, 64
  %v822 = vpop.permute.xlu0 %821
  %v824 = vmul.f32 %v815, %v822
  %826 = vrot.lane.b32.xlu0 %v824, 64
  %v827 = vpop.permute.xlu0 %826
  %v829 = vadd.f32 %v819, %v827
  %v830 = vtanh.pop %v829
  %832 = vrot.lane.b32.xlu0 %v830, 64
  %v833 = vpop.permute.xlu0 %832
  %v835 = vmul.f32 %v817, %v833
  %v837 = vsel %vm199, %v835, 0
  %839 = vmatprep.subr.mxu0 0.0
  %840 = vmatpush1.msra.mxu0 0.0
  %841 = vmatprep.subr.mxu0 0.0
  %842 = vmatpush1.msra.mxu0 0.0
  %843 = vmatprep.subr.mxu0 0.0
  %844 = vmatpush1.msra.mxu0 0.0
  %845 = vmatprep.subr.mxu0 0.0
  %846 = vmatpush1.msra.mxu0 0.0
  %847 = vmatprep.subr.mxu0 0.0
  %848 = vmatpush1.msra.mxu0 0.0
  %849 = vmatprep.subr.mxu0 0.0
  %850 = vmatpush1.msra.mxu0 0.0
  %851 = vmatprep.subr.mxu0 0.0
  %852 = vmatpush1.msra.mxu0 0.0
  %853 = vmatprep.subr.mxu0 0.0
  %854 = vmatpush1.msra.mxu0 0.0
  %855 = vmatprep.subr.mxu0 %v198
  %856 = vmatpush1.msra.mxu0 %v197
  %857 = vmatprep.subr.mxu0 %v196
  %858 = vmatpush1.msra.mxu0 %v195
  %859 = vmatprep.subr.mxu0 %v194
  %860 = vmatpush1.msra.mxu0 %v193
  %861 = vmatprep.subr.mxu0 %v192
  %862 = vmatpush1.msra.mxu0 %v191
  %863 = vmatprep.subr.mxu0 %v190
  %864 = vmatpush1.msra.mxu0 %v189
  %865 = vmatprep.subr.mxu0 %v188
  %866 = vmatpush1.msra.mxu0 %v187
  %867 = vmatprep.subr.mxu0 %v186
  %868 = vmatpush1.msra.mxu0 %v185
  %869 = vmatprep.subr.mxu0 %v184
  %870 = vmatpush1.msra.mxu0 %v183
  %871 = vmatprep.subr.mxu0 0.0
  %872 = vmatpush2.msra.mxu0 0.0
  %873 = vmatprep.subr.mxu0 0.0
  %874 = vmatpush2.msra.mxu0 0.0
  %875 = vmatprep.subr.mxu0 0.0
  %876 = vmatpush2.msra.mxu0 0.0
  %877 = vmatprep.subr.mxu0 0.0
  %878 = vmatpush2.msra.mxu0 0.0
  %879 = vmatprep.subr.mxu0 0.0
  %880 = vmatpush2.msra.mxu0 0.0
  %881 = vmatprep.subr.mxu0 0.0
  %882 = vmatpush2.msra.mxu0 0.0
  %883 = vmatprep.subr.mxu0 0.0
  %884 = vmatpush2.msra.mxu0 0.0
  %885 = vmatprep.subr.mxu0 0.0
  %886 = vmatpush2.msra.mxu0 0.0
  %887 = vmatprep.subr.mxu0 0.0
  %888 = vmatpush2.msra.mxu0 0.0
  %889 = vmatprep.subr.mxu0 0.0
  %890 = vmatpush2.msra.mxu0 0.0
  %891 = vmatprep.subr.mxu0 0.0
  %892 = vmatpush2.msra.mxu0 0.0
  %893 = vmatprep.subr.mxu0 0.0
  %894 = vmatpush2.msra.mxu0 0.0
  %895 = vmatprep.subr.mxu0 0.0
  %896 = vmatpush2.msra.mxu0 0.0
  %897 = vmatprep.subr.mxu0 0.0
  %898 = vmatpush2.msra.mxu0 0.0
  %899 = vmatprep.subr.mxu0 0.0
  %900 = vmatpush2.msra.mxu0 0.0
  %901 = vmatprep.subr.mxu0 0.0
  %902 = vmatpush2.msra.mxu0 0.0
  %903 = vmatprep.mubr.f32.mxu0 0.0
  %904 = vmatmul.mubr.f32.gmra.mxu0 %v837
  %v905 = vpop.f32.mrf.mxu0
  %v906 = vadd.f32 0.0, %v905
  %v907 = vpop.f32.mrf.mxu0
  %v908 = vadd.f32 0.0, %v907
  %909 = vdwg.mxu0
  %v910 = vadd.f32 %v173, %v906
  %v911 = vadd.f32 %v175, %v908
  %v912 = vxor.u32 %v910, 2147483648
  %v913 = vxor.u32 %v911, 2147483648
  %v914 = vmul.f32 %v912, 1.442695
  %v915 = vpow.pop %v914
  %v916 = vmul.f32 %v913, 1.442695
  %v917 = vpow.pop %v916
  %v918 = vadd.f32 %v915, 1.0
  %v919 = vadd.f32 %v917, 1.0
  %v920 = vrcp.pop %v918
  %v921 = vmul.f32 1.0, %v920
  %v922 = vrcp.pop %v919
  %v923 = vmul.f32 1.0, %v922
  %v924 = vtanh.pop %v911
  %v925 = vmul.f32 %v921, %v829
  %927 = vrot.lane.b32.xlu0 %v924, 64
  %v928 = vpop.permute.xlu0 %927
  %v930 = vmul.f32 %v921, %v928
  %932 = vrot.lane.b32.xlu0 %v930, 64
  %v933 = vpop.permute.xlu0 %932
  %v935 = vadd.f32 %v925, %v933
  %v936 = vtanh.pop %v935
  %938 = vrot.lane.b32.xlu0 %v936, 64
  %v939 = vpop.permute.xlu0 %938
  %v941 = vmul.f32 %v923, %v939
  %v943 = vsel %vm199, %v941, 0
  %945 = vmatprep.subr.mxu0 0.0
  %946 = vmatpush1.msra.mxu0 0.0
  %947 = vmatprep.subr.mxu0 0.0
  %948 = vmatpush1.msra.mxu0 0.0
  %949 = vmatprep.subr.mxu0 0.0
  %950 = vmatpush1.msra.mxu0 0.0
  %951 = vmatprep.subr.mxu0 0.0
  %952 = vmatpush1.msra.mxu0 0.0
  %953 = vmatprep.subr.mxu0 0.0
  %954 = vmatpush1.msra.mxu0 0.0
  %955 = vmatprep.subr.mxu0 0.0
  %956 = vmatpush1.msra.mxu0 0.0
  %957 = vmatprep.subr.mxu0 0.0
  %958 = vmatpush1.msra.mxu0 0.0
  %959 = vmatprep.subr.mxu0 0.0
  %960 = vmatpush1.msra.mxu0 0.0
  %961 = vmatprep.subr.mxu0 %v198
  %962 = vmatpush1.msra.mxu0 %v197
  %963 = vmatprep.subr.mxu0 %v196
  %964 = vmatpush1.msra.mxu0 %v195
  %965 = vmatprep.subr.mxu0 %v194
  %966 = vmatpush1.msra.mxu0 %v193
  %967 = vmatprep.subr.mxu0 %v192
  %968 = vmatpush1.msra.mxu0 %v191
  %969 = vmatprep.subr.mxu0 %v190
  %970 = vmatpush1.msra.mxu0 %v189
  %971 = vmatprep.subr.mxu0 %v188
  %972 = vmatpush1.msra.mxu0 %v187
  %973 = vmatprep.subr.mxu0 %v186
  %974 = vmatpush1.msra.mxu0 %v185
  %975 = vmatprep.subr.mxu0 %v184
  %976 = vmatpush1.msra.mxu0 %v183
  %977 = vmatprep.subr.mxu0 0.0
  %978 = vmatpush2.msra.mxu0 0.0
  %979 = vmatprep.subr.mxu0 0.0
  %980 = vmatpush2.msra.mxu0 0.0
  %981 = vmatprep.subr.mxu0 0.0
  %982 = vmatpush2.msra.mxu0 0.0
  %983 = vmatprep.subr.mxu0 0.0
  %984 = vmatpush2.msra.mxu0 0.0
  %985 = vmatprep.subr.mxu0 0.0
  %986 = vmatpush2.msra.mxu0 0.0
  %987 = vmatprep.subr.mxu0 0.0
  %988 = vmatpush2.msra.mxu0 0.0
  %989 = vmatprep.subr.mxu0 0.0
  %990 = vmatpush2.msra.mxu0 0.0
  %991 = vmatprep.subr.mxu0 0.0
  %992 = vmatpush2.msra.mxu0 0.0
  %993 = vmatprep.subr.mxu0 0.0
  %994 = vmatpush2.msra.mxu0 0.0
  %995 = vmatprep.subr.mxu0 0.0
  %996 = vmatpush2.msra.mxu0 0.0
  %997 = vmatprep.subr.mxu0 0.0
  %998 = vmatpush2.msra.mxu0 0.0
  %999 = vmatprep.subr.mxu0 0.0
  %1000 = vmatpush2.msra.mxu0 0.0
  %1001 = vmatprep.subr.mxu0 0.0
  %1002 = vmatpush2.msra.mxu0 0.0
  %1003 = vmatprep.subr.mxu0 0.0
  %1004 = vmatpush2.msra.mxu0 0.0
  %1005 = vmatprep.subr.mxu0 0.0
  %1006 = vmatpush2.msra.mxu0 0.0
  %1007 = vmatprep.subr.mxu0 0.0
  %1008 = vmatpush2.msra.mxu0 0.0
  %1009 = vmatprep.mubr.f32.mxu0 0.0
  %1010 = vmatmul.mubr.f32.gmra.mxu0 %v943
  %v1011 = vpop.f32.mrf.mxu0
  %v1012 = vadd.f32 0.0, %v1011
  %v1013 = vpop.f32.mrf.mxu0
  %v1014 = vadd.f32 0.0, %v1013
  %1015 = vdwg.mxu0
  %v1016 = vadd.f32 %v179, %v1012
  %v1017 = vadd.f32 %v181, %v1014
  %v1018 = vxor.u32 %v1016, 2147483648
  %v1019 = vxor.u32 %v1017, 2147483648
  %v1020 = vmul.f32 %v1018, 1.442695
  %v1021 = vpow.pop %v1020
  %v1022 = vmul.f32 %v1019, 1.442695
  %v1023 = vpow.pop %v1022
  %v1024 = vadd.f32 %v1021, 1.0
  %v1025 = vadd.f32 %v1023, 1.0
  %v1026 = vrcp.pop %v1024
  %v1027 = vmul.f32 1.0, %v1026
  %v1028 = vrcp.pop %v1025
  %v1029 = vmul.f32 1.0, %v1028
  %v1030 = vtanh.pop %v1017
  %v1031 = vmul.f32 %v1027, %v935
  %1033 = vrot.lane.b32.xlu0 %v1030, 64
  %v1034 = vpop.permute.xlu0 %1033
  %v1036 = vmul.f32 %v1027, %v1034
  %1038 = vrot.lane.b32.xlu0 %v1036, 64
  %v1039 = vpop.permute.xlu0 %1038
  %v1041 = vadd.f32 %v1031, %v1039
  %v1042 = vtanh.pop %v1041
  %1044 = vrot.lane.b32.xlu0 %v1042, 64
  %v1045 = vpop.permute.xlu0 %1044
  %v1047 = vmul.f32 %v1029, %v1045
  %v1048 = vld [vmem:[%s4] sm:$0xff]
  %v1049 = vld [vmem:[%s4 + $0x8] sm:$0xff]
  %v1050 = vld [vmem:[%s4 + $0x10] sm:$0xff]
  %v1051 = vld [vmem:[%s4 + $0x18] sm:$0xff]
  %v1052 = vld [vmem:[%s4 + $0x20] sm:$0xff]
  %v1053 = vld [vmem:[%s4 + $0x28] sm:$0xff]
  %v1054 = vld [vmem:[%s4 + $0x30] sm:$0xff]
  %v1055 = vld [vmem:[%s4 + $0x38] sm:$0xff]
  %v1056 = vld [vmem:[%s5] sm:$0x1]
  %v1058 = vlaneseq
  %v1059 = vshrl.u32 %v1058, 7
  %v1060 = vsub.s32 0, %v1059
  %v1061 = vrot.slane %v1056, %v1060
  %v1064 = vsel %vm199, %v1047, 0
  %1066 = vmatprep.subr.mxu0 0.0
  %1067 = vmatpush1.msra.mxu0 0.0
  %1068 = vmatprep.subr.mxu0 0.0
  %1069 = vmatpush1.msra.mxu0 0.0
  %1070 = vmatprep.subr.mxu0 0.0
  %1071 = vmatpush1.msra.mxu0 0.0
  %1072 = vmatprep.subr.mxu0 0.0
  %1073 = vmatpush1.msra.mxu0 0.0
  %1074 = vmatprep.subr.mxu0 0.0
  %1075 = vmatpush1.msra.mxu0 0.0
  %1076 = vmatprep.subr.mxu0 0.0
  %1077 = vmatpush1.msra.mxu0 0.0
  %1078 = vmatprep.subr.mxu0 0.0
  %1079 = vmatpush1.msra.mxu0 0.0
  %1080 = vmatprep.subr.mxu0 0.0
  %1081 = vmatpush1.msra.mxu0 0.0
  %1082 = vmatprep.subr.mxu0 0.0
  %1083 = vmatpush1.msra.mxu0 %v1055
  %1084 = vmatprep.subr.mxu0 0.0
  %1085 = vmatpush1.msra.mxu0 %v1054
  %1086 = vmatprep.subr.mxu0 0.0
  %1087 = vmatpush1.msra.mxu0 %v1053
  %1088 = vmatprep.subr.mxu0 0.0
  %1089 = vmatpush1.msra.mxu0 %v1052
  %1090 = vmatprep.subr.mxu0 0.0
  %1091 = vmatpush1.msra.mxu0 %v1051
  %1092 = vmatprep.subr.mxu0 0.0
  %1093 = vmatpush1.msra.mxu0 %v1050
  %1094 = vmatprep.subr.mxu0 0.0
  %1095 = vmatpush1.msra.mxu0 %v1049
  %1096 = vmatprep.subr.mxu0 0.0
  %1097 = vmatpush1.msra.mxu0 %v1048
  %1098 = vmatprep.subr.mxu0 0.0
  %1099 = vmatpush2.msra.mxu0 0.0
  %1100 = vmatprep.subr.mxu0 0.0
  %1101 = vmatpush2.msra.mxu0 0.0
  %1102 = vmatprep.subr.mxu0 0.0
  %1103 = vmatpush2.msra.mxu0 0.0
  %1104 = vmatprep.subr.mxu0 0.0
  %1105 = vmatpush2.msra.mxu0 0.0
  %1106 = vmatprep.subr.mxu0 0.0
  %1107 = vmatpush2.msra.mxu0 0.0
  %1108 = vmatprep.subr.mxu0 0.0
  %1109 = vmatpush2.msra.mxu0 0.0
  %1110 = vmatprep.subr.mxu0 0.0
  %1111 = vmatpush2.msra.mxu0 0.0
  %1112 = vmatprep.subr.mxu0 0.0
  %1113 = vmatpush2.msra.mxu0 0.0
  %1114 = vmatprep.subr.mxu0 0.0
  %1115 = vmatpush2.msra.mxu0 0.0
  %1116 = vmatprep.subr.mxu0 0.0
  %1117 = vmatpush2.msra.mxu0 0.0
  %1118 = vmatprep.subr.mxu0 0.0
  %1119 = vmatpush2.msra.mxu0 0.0
  %1120 = vmatprep.subr.mxu0 0.0
  %1121 = vmatpush2.msra.mxu0 0.0
  %1122 = vmatprep.subr.mxu0 0.0
  %1123 = vmatpush2.msra.mxu0 0.0
  %1124 = vmatprep.subr.mxu0 0.0
  %1125 = vmatpush2.msra.mxu0 0.0
  %1126 = vmatprep.subr.mxu0 0.0
  %1127 = vmatpush2.msra.mxu0 0.0
  %1128 = vmatprep.subr.mxu0 0.0
  %1129 = vmatpush2.msra.mxu0 0.0
  %1130 = vmatprep.mubr.f32.mxu0 0.0
  %1131 = vmatmul.mubr.f32.gmra.mxu0 %v1064
  %v1132 = vpop.f32.mrf.mxu0
  %v1133 = vadd.f32 %v1061, %v1132
  %v1134 = vpop.f32.mrf.mxu0
  %1135 = vdwg.mxu0
  %1136 = vst [vmem:[%s6] sm:$0xff] %v1133
  // Predicated region
  $region26: #{lstm_model_forward.1} parent=0 // pred_check
    _
  $region27: #{lstm_model_forward.1} parent=0 // pred_check_branch
    %1138 = sbr.rel (0) target = $region29
  $region28: #{lstm_model_forward.1} parent=0 // pred_region
    _
  $region29: #{lstm_model_forward.1} parent=0 // pred_fallthru
    _
  // Predicated region
  $region30: #{lstm_model_forward.1} parent=0 // pred_check
    _
  $region31: #{lstm_model_forward.1} parent=0 // pred_check_branch
    %1140 = sbr.rel (0) target = $region33
  $region32: #{lstm_model_forward.1} parent=0 // pred_region
    _
  $region33: #{lstm_model_forward.1} parent=0 // pred_fallthru
    _

</llo_original>
